<compile_context>
chip_gen: v7x
topology: tpu7x:2x2x1
jax: 0.10.0
libtpu: 0.0.40
codegen_flags: <defaults>
</compile_context>

<pallas_src>
import functools

import jax
import jax.numpy as jnp
from jax.experimental import pallas as pl
from jax.experimental.pallas import tpu as pltpu


def _round_up(a, b):
    return (a + b - 1) // b * b


def _kernel_resident_xw(adj_ref, xw_ref, o_ref, *, tk):
    # adj_ref: (tm, tk) f32 tile.  xw_ref: (K, out_pad) bf16, fully
    # VMEM-resident (constant index_map -> fetched once).  o_ref: (tm, out_pad)
    # f32 with a k-invariant block index, so it doubles as the accumulator.
    k = pl.program_id(1)

    @pl.when(k == 0)
    def _():
        o_ref[...] = jnp.zeros_like(o_ref)

    a = adj_ref[...].astype(jnp.bfloat16)          # VPU cast, hidden under DMA
    start = pl.multiple_of(k * tk, tk)
    b = xw_ref[pl.ds(start, tk), :]
    o_ref[...] += jnp.dot(a, b, preferred_element_type=jnp.float32)


def _kernel_streamed_xw(adj_ref, xw_ref, o_ref):
    # Fallback when xw is too large to keep resident: xw tile streamed per k.
    k = pl.program_id(1)

    @pl.when(k == 0)
    def _():
        o_ref[...] = jnp.zeros_like(o_ref)

    o_ref[...] += jnp.dot(adj_ref[...].astype(jnp.bfloat16), xw_ref[...],
                          preferred_element_type=jnp.float32)


_XW_RESIDENT_BUDGET = 8 << 20  # bytes for a single bf16 copy of xw in VMEM


def graph_conv(adj, x, w_t, *, tm=512, tk=2048):
    """GraphConv forward (eval mode): out = (adj @ x) @ w_t.

    adj: [N, N] f32 dense adjacency, x: [N, in_dim] f32 node features,
    w_t: [in_dim, out_dim] f32 (transpose of PyTorch Linear weight).
    Returns [N, out_dim] f32.
    """
    n = adj.shape[0]
    out_dim = w_t.shape[1]

    # Re-associated small pre-GEMM in plain JAX.
    xw = jnp.dot(x.astype(jnp.float32), w_t.astype(jnp.float32))  # [N, out_dim]

    # Lane-dense output: pad out_dim up to 128 (no wider -- only adds writeback).
    out_pad = _round_up(max(out_dim, 128), 128)

    # Tile sizing: clamp to the 128-padded problem; keep >= 2 row tiles so both
    # v7x TensorCores get work (neutral on single-TC v5e/v6e).
    n_pad = _round_up(n, 128)
    tm = min(tm, n_pad)
    tk = min(tk, n_pad)
    if n_pad // tm < 2 and n_pad >= 256:
        tm = _round_up(n_pad // 2, 128)

    n_rows = _round_up(n, tm)
    n_cols = _round_up(n, tk)

    # adj stays f32 and is streamed as-is; bf16 cast happens per tile in-kernel.
    # Pad only if the tiles don't divide N (zero padding is exact: padded adj
    # rows/cols and padded xw rows contribute zeros, sliced away at the end).
    if n_rows == n and n_cols == n:
        adj_p = adj.astype(jnp.float32)
    else:
        adj_p = jnp.pad(adj.astype(jnp.float32),
                        ((0, n_rows - n), (0, n_cols - n)))

    # xw is tiny: pad + bf16 cast once in the wrapper.
    xw_p = jnp.pad(xw, ((0, n_cols - n), (0, out_pad - out_dim))).astype(jnp.bfloat16)

    grid = (n_rows // tm, n_cols // tk)

    xw_resident = n_cols * out_pad * 2 <= _XW_RESIDENT_BUDGET
    if xw_resident:
        kernel = functools.partial(_kernel_resident_xw, tk=tk)
        xw_spec = pl.BlockSpec((n_cols, out_pad), lambda i, k: (0, 0))
        xw_vmem = n_cols * out_pad * 2 * 2           # (conservative: 2 buffers)
        xw_hbm = n_cols * out_pad * 2                # fetched once
    else:
        kernel = _kernel_streamed_xw
        xw_spec = pl.BlockSpec((tk, out_pad), lambda i, k: (k, 0))
        xw_vmem = tk * out_pad * 2 * 2
        xw_hbm = grid[0] * n_cols * out_pad * 2      # re-streamed per row tile

    # VMEM budget: double-buffered f32 adj tile + xw + double-buffered f32
    # output block + in-kernel bf16 cast temp + headroom.  Capped for v7x's
    # 64 MiB physical VMEM.
    vmem_bytes = ((tm * tk * 4) * 2 + xw_vmem + (tm * out_pad * 4) * 2
                  + tm * tk * 2 + (2 << 20))
    vmem_limit = int(min(max(vmem_bytes, 32 << 20), 48 << 20))

    cost = pl.CostEstimate(
        flops=2 * n_rows * n_cols * out_pad,
        bytes_accessed=n_rows * n_cols * 4 + xw_hbm + n_rows * out_pad * 4,
        transcendentals=0,
    )

    out = pl.pallas_call(
        kernel,
        out_shape=jax.ShapeDtypeStruct((n_rows, out_pad), jnp.float32),
        grid_spec=pltpu.PrefetchScalarGridSpec(
            num_scalar_prefetch=0,
            grid=grid,
            in_specs=[
                pl.BlockSpec((tm, tk), lambda i, k: (i, k)),  # adj tile (f32)
                xw_spec,                                      # xw (resident/streamed)
            ],
            out_specs=pl.BlockSpec((tm, out_pad), lambda i, k: (i, 0)),
        ),
        compiler_params=pltpu.CompilerParams(
            dimension_semantics=("parallel", "arbitrary"),
            vmem_limit_bytes=vmem_limit,
        ),
        cost_estimate=cost,
    )(adj_p, xw_p)

    return out[:n, :out_dim]


def xavier_uniform(key, shape):
    # PyTorch nn.init.xavier_uniform_ for a Linear weight [out_dim, in_dim].
    fan_out, fan_in = shape
    bound = jnp.sqrt(6.0 / (fan_in + fan_out))
    return jax.random.uniform(key, shape, jnp.float32, -bound, bound)


if __name__ == "__main__":
    # Small deterministic example: N=256 nodes, in_dim=32, out_dim=16.
    N, IN_DIM, OUT_DIM = 256, 32, 16

    key = jax.random.PRNGKey(0)
    k_adj, k_x, k_w = jax.random.split(key, 3)

    # Dense adjacency with self loops, row-normalized (typical GCN preprocessing).
    adj_raw = (jax.random.uniform(k_adj, (N, N)) > 0.8).astype(jnp.float32)
    adj_raw = adj_raw + jnp.eye(N, dtype=jnp.float32)
    adj = adj_raw / jnp.sum(adj_raw, axis=1, keepdims=True)

    x = jax.random.normal(k_x, (N, IN_DIM), jnp.float32)

    # PyTorch Linear weight is [out_dim, in_dim]; kernel takes its transpose.
    w = xavier_uniform(k_w, (OUT_DIM, IN_DIM))
    w_t = w.T  # [in_dim, out_dim]

    # TODO(synk): nn.Dropout(0.5) omitted (identity in eval); activation is
    # None by default in the module, so forward == (adj @ x) @ W^T.

    # tm=tk=128 so the small demo exercises the multi-tile accumulate path
    # (grid = (2, 2)) and the resident-xw slicing; the defaults (512/2048)
    # are sized for large graphs.
    run = jax.jit(lambda a, f, w_: graph_conv(a, f, w_, tm=128, tk=128))
    out = jax.block_until_ready(run(adj, x, w_t))

    # Reference in plain f32 JAX (same math as the PyTorch forward in eval).
    ref = (adj @ x) @ w_t
    assert out.shape == (N, OUT_DIM)
    # bf16 MXU inputs (f32 accumulation) -> slightly relaxed tolerance.
    err = float(jnp.max(jnp.abs(out - ref)))
    assert jnp.allclose(out, ref, atol=2e-2, rtol=2e-2), err

    print("KERNEL_OK")
</pallas_src>

<mosaic_0001>
module attributes {stable_mosaic.version = 11 : i64} {
  func.func @_kernel_resident_xw(%arg0: i32, %arg1: i32, %arg2: memref<128x128xf32, #tpu.memory_space<vmem>>, %arg3: memref<256x128xbf16, #tpu.memory_space<vmem>>, %arg4: memref<128x128xf32, #tpu.memory_space<vmem>>) attributes {dimension_semantics = [#tpu.dimension_semantics<parallel>, #tpu.dimension_semantics<arbitrary>], iteration_bounds = array<i64: 2, 2>, scalar_prefetch = 0 : i64, scratch_operands = 0 : i64, tpu.core_type = #tpu.core_type<tc>, window_params = [{transform_indices = @transform_0, window_bounds = array<i64: 128, 128>}, {pipeline_mode = #tpu.pipeline_mode<synchronous>, transform_indices = @transform_1, window_bounds = array<i64: 256, 128>}, {transform_indices = @transform_2, window_bounds = array<i64: 128, 128>}]} {
    %c0_i32 = arith.constant 0 : i32
    %0 = arith.cmpi eq, %arg1, %c0_i32 : i32
    %1 = arith.extui %0 : i1 to i32
    %c0_i32_0 = arith.constant 0 : i32
    %2 = arith.cmpi ne, %1, %c0_i32_0 : i32
    scf.if %2 {
      %cst_7 = arith.constant 0.000000e+00 : f32
      %13 = vector.broadcast %cst_7 : f32 to vector<128x128xf32>
      %c0_8 = arith.constant 0 : index
      %c0_9 = arith.constant 0 : index
      %14 = vector.load %arg4[%c0_8, %c0_9] : memref<128x128xf32, #tpu.memory_space<vmem>>, vector<128x128xf32>
      tpu.vector_store %arg4[%c0_8, %c0_9], %13 {strides = array<i32>} : memref<128x128xf32, #tpu.memory_space<vmem>>, vector<128x128xf32>,
    } else {
    }
    %c0 = arith.constant 0 : index
    %c0_1 = arith.constant 0 : index
    %3 = vector.load %arg2[%c0, %c0_1] : memref<128x128xf32, #tpu.memory_space<vmem>>, vector<128x128xf32>
    %4 = arith.truncf %3 : vector<128x128xf32> to vector<128x128xbf16>
    %c128_i32 = arith.constant 128 : i32
    %5 = arith.muli %arg1, %c128_i32 : i32
    %6 = tpu.assume_multiple %5, 128 : i32
    %7 = arith.index_cast %6 : i32 to index
    %c0_2 = arith.constant 0 : index
    %8 = vector.load %arg3[%7, %c0_2] : memref<256x128xbf16, #tpu.memory_space<vmem>>, vector<128x128xbf16>
    %c0_3 = arith.constant 0 : index
    %c0_4 = arith.constant 0 : index
    %9 = vector.load %arg4[%c0_3, %c0_4] : memref<128x128xf32, #tpu.memory_space<vmem>>, vector<128x128xf32>
    %cst = arith.constant dense<0.000000e+00> : vector<128x128xf32>
    %10 = tpu.matmul %4, %8, %cst {dimension_numbers = #tpu.dot_dimension_numbers<[1], [0], [0], [1], [0, 0, 1, 1], [], []>} : vector<128x128xbf16>, vector<128x128xbf16>, vector<128x128xf32> -> vector<128x128xf32>
    %11 = arith.addf %9, %10 : vector<128x128xf32>
    %c0_5 = arith.constant 0 : index
    %c0_6 = arith.constant 0 : index
    %12 = vector.load %arg4[%c0_5, %c0_6] : memref<128x128xf32, #tpu.memory_space<vmem>>, vector<128x128xf32>
    tpu.vector_store %arg4[%c0_5, %c0_6], %11 {strides = array<i32>} : memref<128x128xf32, #tpu.memory_space<vmem>>, vector<128x128xf32>,
    return
  }
  func.func @transform_0(%arg0: i32, %arg1: i32) -> (i32, i32) {
    %c0_i32 = arith.constant 0 : i32
    return %arg0, %arg1 : i32, i32
  }
  func.func @transform_1(%arg0: i32, %arg1: i32) -> (i32, i32) {
    %c0_i32 = arith.constant 0 : i32
    %c0_i32_0 = arith.constant 0 : i32
    %c0_i32_1 = arith.constant 0 : i32
    return %c0_i32, %c0_i32_0 : i32, i32
  }
  func.func @transform_2(%arg0: i32, %arg1: i32) -> (i32, i32) {
    %c0_i32 = arith.constant 0 : i32
    %c0_i32_0 = arith.constant 0 : i32
    return %arg0, %c0_i32 : i32, i32
  }
}

</mosaic_0001>

<llo_original>
// kernel: _lambda_.1
$region0: #{_lambda_.1}
  #allocation0 [shape = 'u32[]', space=smem, size = 0x4, offset = 0x4, fixed_abs, tag = 'smem constant byte address 0x4 - core index']
  #allocation1 [shape = 'u32[144,128]{1,0:T(1,128)}', space=vmem, size = 0x12000, scoped, tag = 'internal scratch']
  %s0 = inlined_call_operand.hbm [shape: f32[256,256], index: 0, kind: input, shape index: {}]
  %s1 = inlined_call_operand.vmem [shape: bf16[256,128], index: 1, kind: input, shape index: {}]
  %s2 = inlined_call_operand.vmem [shape: f32[256,128], index: 2, kind: output, shape index: {}]
  %s3 = sld [smem:[#allocation0]]
  $region49: #{_lambda_.1} parent=0
    _
  %s5 = ssub.s32 1, %s3
  %s6 = scalar_select 0, %s5, %s3
  $region1: #{_lambda_.1} parent=0
    #allocation2 [shape = 'u8[131072]{0}', space=vmem, size = 0x20000, scoped, tag = 'input window, operand 0']
    #allocation3 [shape = 's32[2]{0}', space=sflag, size = 0x8, scoped, tag = 'scoped memory for _lambda_.1']
    %7 = vsyncpa [#allocation3], 0
    %s8 = scalar_lea.sflag [#allocation3], 1
    %9 = vsyncpa %s8, 0
    loop: start=0, step=1, limit=6
    $region2: #{_lambda_.1} parent=1 // loop_pre_header
      _
    $region3: #{_lambda_.1} parent=1 // loop_header
      %s11 = sphi 0, %s15
      %p12 = scmp.ge.s32.totalorder %s11, 6
      %s18 = sphi 0, %s30
      %s19 = sphi 0, %s26
      %s20 = sphi 0, %s18
      %s21 = sphi 0, %s19
      %s22 = sphi 0, %s20
      %s23 = sphi 0, %s21
      %s35 = sphi 0, %s37
      %s38 = sphi 0, %s35
      %s39 = sphi 0, %s38
      %s55 = sphi 0, %s39
      %s59 = sphi 0, %s59
      %s61 = sphi 0, %s59
      %s62 = sphi 0, %s61
      %s76 = sphi 0, %s62
      %s82 = sphi 0, %s84
      %s85 = sphi 0, %s82
      %s86 = sphi 0, %s85
      %s102 = sphi 0, %s86
    $region4: #{_lambda_.1} parent=1 // loop_header_branch
      %14 = sbr.rel (%p12) target = $region8
    $region5: #{_lambda_.1} parent=1 // loop_body
      %s16 = ssub.s32 %s11, 1
      %s17 = ssub.s32 %s11, 2
      %s24 = sadd.s32 1, %s19
      %p25 = scmp.ge.s32.totalorder %s24, 2
      %s26 = scalar_select %p25, 0, %s24
      %s27 = sadd.s32 1, %s18
      %s28 = scalar_select %p25, %s27, %s18
      %p29 = scmp.ge.s32.totalorder %s28, 2
      %s30 = scalar_select %p29, 0, %s28
      %s31 = ssub.s32 %s18, %s30
      %s32 = ssub.s32 %s19, %s26
      %s33 = sor.u32 %s31, %s32
      %p34 = scmp.eq.s32.totalorder %s33, 0
      %s36 = sadd.s32 %s35, 1
      %s37 = scalar_select %p34, %s35, %s36
      %p40 = pneg %p34
      %p41 = scmp.eq.s32.totalorder %s11, 3
      %p42 = por %p40, %p41
      %p43 = scmp.ne.s32.totalorder %s35, %s38
      %p44 = scmp.eq.s32.totalorder %s11, 0
      %p45 = por %p43, %p44
      %p46 = scmp.ne.s32.totalorder %s35, %s38
      %p47 = scmp.eq.s32.totalorder %s16, 3
      %p48 = por %p46, %p47
      %p49 = scmp.ne.s32.totalorder %s38, %s39
      %p50 = scmp.eq.s32.totalorder %s16, 0
      %p51 = por %p49, %p50
      %p52 = scmp.ne.s32.totalorder %s38, %s39
      %p53 = scmp.eq.s32.totalorder %s17, 3
      %p54 = por %p52, %p53
      %p56 = scmp.ne.s32.totalorder %s39, %s55
      %p57 = scmp.eq.s32.totalorder %s17, 0
      %p58 = por %p56, %p57
      %s60 = sadd.s32 %s59, 1
      %p63 = scmp.eq.s32.totalorder %s11, 3
      %p64 = scmp.ne.s32.totalorder %s59, %s61
      %p65 = scmp.eq.s32.totalorder %s11, 0
      %p66 = por %p64, %p65
      %p67 = scmp.ne.s32.totalorder %s59, %s61
      %p68 = scmp.eq.s32.totalorder %s16, 3
      %p69 = por %p67, %p68
      %p70 = scmp.ne.s32.totalorder %s61, %s62
      %p71 = scmp.eq.s32.totalorder %s16, 0
      %p72 = por %p70, %p71
      %p73 = scmp.ne.s32.totalorder %s61, %s62
      %p74 = scmp.eq.s32.totalorder %s17, 3
      %p75 = por %p73, %p74
      %p77 = scmp.ne.s32.totalorder %s62, %s76
      %p78 = scmp.eq.s32.totalorder %s17, 0
      %p79 = por %p77, %p78
      %s80 = ssub.s32 %s18, %s30
      %p81 = scmp.eq.s32.totalorder %s80, 0
      %s83 = sadd.s32 %s82, 1
      %s84 = scalar_select %p81, %s82, %s83
      %p87 = pneg %p81
      %p88 = scmp.eq.s32.totalorder %s11, 3
      %p89 = por %p87, %p88
      %p90 = scmp.ne.s32.totalorder %s82, %s85
      %p91 = scmp.eq.s32.totalorder %s11, 0
      %p92 = por %p90, %p91
      %p93 = scmp.ne.s32.totalorder %s82, %s85
      %p94 = scmp.eq.s32.totalorder %s16, 3
      %p95 = por %p93, %p94
      %p96 = scmp.ne.s32.totalorder %s85, %s86
      %p97 = scmp.eq.s32.totalorder %s16, 0
      %p98 = por %p96, %p97
      %p99 = scmp.ne.s32.totalorder %s85, %s86
      %p100 = scmp.eq.s32.totalorder %s17, 3
      %p101 = por %p99, %p100
      %p103 = scmp.ne.s32.totalorder %s86, %s102
      %p104 = scmp.eq.s32.totalorder %s17, 0
      %p105 = por %p103, %p104
      %p106 = scmp.le.s32.totalorder 1, %s11
      %p107 = scmp.lt.s32.totalorder %s11, 5
      %p108 = pnand %p106, %p107
      %p109 = pneg %p108
      // Predicated region
      $region9: #{_lambda_.1} parent=5 // pred_check
        _
      $region10: #{_lambda_.1} parent=5 // pred_check_branch
        %111 = sbr.rel (%p108) target = $region12
      $region11: #{_lambda_.1} parent=5 // pred_region
        %s112 = ssub.s32 %s11, 1
        // Predicated region
        $region13: #{_lambda_.1} parent=11 // pred_check
          %p113 = pneg %p72
        $region14: #{_lambda_.1} parent=11 // pred_check_branch
          %115 = sbr.rel (%p113) target = $region16
        $region15: #{_lambda_.1} parent=11 // pred_region
          _
        $region16: #{_lambda_.1} parent=11 // pred_fallthru
          _
      $region12: #{_lambda_.1} parent=5 // pred_fallthru
        _
      %p116 = scmp.lt.s32.totalorder %s11, 4
      // Predicated region
      $region17: #{_lambda_.1} parent=5 // pred_check
        %p117 = pneg %p116
      $region18: #{_lambda_.1} parent=5 // pred_check_branch
        %119 = sbr.rel (%p117) target = $region20
      $region19: #{_lambda_.1} parent=5 // pred_region
        // Predicated region
        $region21: #{_lambda_.1} parent=19 // pred_check
          %p120 = pneg %p45
        $region22: #{_lambda_.1} parent=19 // pred_check_branch
          %122 = sbr.rel (%p120) target = $region24
        $region23: #{_lambda_.1} parent=19 // pred_region
          %s123 = sand.u32 %s35, 1
          %s124 = scalar_lea.sflag [#allocation3], %s123
          %s125 = sand.u32 %s35, 1
          %s126 = smul.addr %s125, 128
          %s127 = scalar_lea.vmem [#allocation2], %s126
          %s128 = smul.u32 16, %s18
          %s130 = ssub.s32 2048, 2048
          %131 = vsyncadd %s124, %s130
          %s132 = smul.addr %s128, 2
          %s133 = sadd.s32 %s19, %s132
          %s134 = smul.addr %s133, 128
          %s135 = scalar_lea.hbm %s0, %s134
          %s136 = sshll.u32 %s127, 4
          %s137 = int_to_ptr.vmem [resolvable:$true] %s136
          %142 = dma.hbm_to_vmem [thread:$0]  %s135, 2048, %s137, %s124, 256, 128, 8
        $region24: #{_lambda_.1} parent=19 // pred_fallthru
          _
      $region20: #{_lambda_.1} parent=5 // pred_fallthru
        _
      %p143 = scmp.le.s32.totalorder 1, %s11
      %p144 = scmp.lt.s32.totalorder %s11, 5
      %p145 = pnand %p143, %p144
      %p146 = pneg %p145
      // Predicated region
      $region25: #{_lambda_.1} parent=5 // pred_check
        _
      $region26: #{_lambda_.1} parent=5 // pred_check_branch
        %148 = sbr.rel (%p145) target = $region28
      $region27: #{_lambda_.1} parent=5 // pred_region
        %s149 = ssub.s32 %s11, 1
        %s150 = sand.u32 %s38, 1
        %s151 = scalar_lea.sflag [#allocation3], %s150
        %s152 = sand.u32 %s38, 1
        %s153 = smul.addr %s152, 128
        %s154 = scalar_lea.vmem [#allocation2], %s153
        // Predicated region
        $region29: #{_lambda_.1} parent=27 // pred_check
          %p155 = pneg %p51
        $region30: #{_lambda_.1} parent=27 // pred_check_branch
          %157 = sbr.rel (%p155) target = $region32
        $region31: #{_lambda_.1} parent=27 // pred_region
          %158 = dma.done %s151, 2048
        $region32: #{_lambda_.1} parent=27 // pred_fallthru
          _
        %s159 = sand.u32 %s38, 1
        %s160 = scalar_lea.sflag [#allocation3], %s159
        %s161 = sand.u32 %s38, 1
        %s162 = smul.addr %s161, 128
        %s163 = scalar_lea.vmem [#allocation2], %s162
        %p164 = pneg %p51
        %p165 = pneg %p48
        %p166 = pneg %p72
        %p167 = pneg %p69
        %p168 = pneg %p98
        %p169 = pneg %p95
        %s170 = smul.u32 16, %s20
        %p171 = scmp.lt.s32.totalorder %s170, 31
        %s172 = scalar_select %p171, %s170, 31
        %s173 = smul.addr %s172, 8
        %s174 = scalar_lea.vmem %s2, %s173
        %s175 = smul.u32 16, %s20
        %s176 = smul.u32 16, %s20
        %p177 = scmp.lt.s32.totalorder %s176, 31
        %s178 = scalar_select %p177, %s176, 31
        %s179 = smul.addr %s178, 8
        %s180 = scalar_lea.vmem %s2, %s179
        %s181 = smul.u32 16, %s20
        %p183 = scmp.eq.s32.totalorder %s21, 0
        // Predicated region
        $region33: #{_lambda_.1} parent=27 // pred_check
          %p184 = pneg %p183
        $region34: #{_lambda_.1} parent=27 // pred_check_branch
          %186 = sbr.rel (%p184) target = $region36
        $region35: #{_lambda_.1} parent=27 // pred_region
          %187 = vst [vmem:[%s180] sm:$0xff] 0.0
          %188 = vst [vmem:[%s180 + $0x8] sm:$0xff] 0.0
          %189 = vst [vmem:[%s180 + $0x10] sm:$0xff] 0.0
          %190 = vst [vmem:[%s180 + $0x18] sm:$0xff] 0.0
          %191 = vst [vmem:[%s180 + $0x20] sm:$0xff] 0.0
          %192 = vst [vmem:[%s180 + $0x28] sm:$0xff] 0.0
          %193 = vst [vmem:[%s180 + $0x30] sm:$0xff] 0.0
          %194 = vst [vmem:[%s180 + $0x38] sm:$0xff] 0.0
          %195 = vst [vmem:[%s180 + $0x40] sm:$0xff] 0.0
          %196 = vst [vmem:[%s180 + $0x48] sm:$0xff] 0.0
          %197 = vst [vmem:[%s180 + $0x50] sm:$0xff] 0.0
          %198 = vst [vmem:[%s180 + $0x58] sm:$0xff] 0.0
          %199 = vst [vmem:[%s180 + $0x60] sm:$0xff] 0.0
          %200 = vst [vmem:[%s180 + $0x68] sm:$0xff] 0.0
          %201 = vst [vmem:[%s180 + $0x70] sm:$0xff] 0.0
          %202 = vst [vmem:[%s180 + $0x78] sm:$0xff] 0.0
        $region36: #{_lambda_.1} parent=27 // pred_fallthru
          _
        %v203 = vld [vmem:[%s154] sm:$0xff]
        %v204 = vld [vmem:[%s154 + $0x8] sm:$0xff]
        %v205 = vld [vmem:[%s154 + $0x10] sm:$0xff]
        %v206 = vld [vmem:[%s154 + $0x18] sm:$0xff]
        %v207 = vld [vmem:[%s154 + $0x20] sm:$0xff]
        %v208 = vld [vmem:[%s154 + $0x28] sm:$0xff]
        %v209 = vld [vmem:[%s154 + $0x30] sm:$0xff]
        %v210 = vld [vmem:[%s154 + $0x38] sm:$0xff]
        %v211 = vld [vmem:[%s154 + $0x40] sm:$0xff]
        %v212 = vld [vmem:[%s154 + $0x48] sm:$0xff]
        %v213 = vld [vmem:[%s154 + $0x50] sm:$0xff]
        %v214 = vld [vmem:[%s154 + $0x58] sm:$0xff]
        %v215 = vld [vmem:[%s154 + $0x60] sm:$0xff]
        %v216 = vld [vmem:[%s154 + $0x68] sm:$0xff]
        %v217 = vld [vmem:[%s154 + $0x70] sm:$0xff]
        %v218 = vld [vmem:[%s154 + $0x78] sm:$0xff]
        %v219 = vpack.c.bf16 %v204, %v203
        %v220 = vpack.c.bf16 %v206, %v205
        %v221 = vpack.c.bf16 %v208, %v207
        %v222 = vpack.c.bf16 %v210, %v209
        %v223 = vpack.c.bf16 %v212, %v211
        %v224 = vpack.c.bf16 %v214, %v213
        %v225 = vpack.c.bf16 %v216, %v215
        %v226 = vpack.c.bf16 %v218, %v217
        %s227 = smul.u32 %s21, 128
        %s228 = sshra.s32 %s227, 3
        %s229 = sand.u32 %s227, 7
        %s230 = smul.addr %s228, 4
        %s231 = scalar_lea.vmem %s1, %s230
        %v232 = vld [vmem:[%s231] sm:$0xf]
        %v233 = vld [vmem:[%s231 + $0x4] sm:$0xf]
        %v234 = vld [vmem:[%s231 + $0x8] sm:$0xf]
        %v235 = vld [vmem:[%s231 + $0xc] sm:$0xf]
        %v236 = vld [vmem:[%s231 + $0x10] sm:$0xf]
        %v237 = vld [vmem:[%s231 + $0x14] sm:$0xf]
        %v238 = vld [vmem:[%s231 + $0x18] sm:$0xf]
        %v239 = vld [vmem:[%s231 + $0x1c] sm:$0xf]
        %v240 = vld [vmem:[%s231 + $0x20] sm:$0xf]
        %v241 = vld [vmem:[%s231 + $0x24] sm:$0xf]
        %v242 = vld [vmem:[%s231 + $0x28] sm:$0xf]
        %v243 = vld [vmem:[%s231 + $0x2c] sm:$0xf]
        %v244 = vld [vmem:[%s231 + $0x30] sm:$0xf]
        %v245 = vld [vmem:[%s231 + $0x34] sm:$0xf]
        %v246 = vld [vmem:[%s231 + $0x38] sm:$0xf]
        %v247 = vld [vmem:[%s231 + $0x3c] sm:$0xf]
        %v248 = vld [vmem:[%s180] sm:$0xff]
        %v249 = vld [vmem:[%s180 + $0x8] sm:$0xff]
        %v250 = vld [vmem:[%s180 + $0x10] sm:$0xff]
        %v251 = vld [vmem:[%s180 + $0x18] sm:$0xff]
        %v252 = vld [vmem:[%s180 + $0x20] sm:$0xff]
        %v253 = vld [vmem:[%s180 + $0x28] sm:$0xff]
        %v254 = vld [vmem:[%s180 + $0x30] sm:$0xff]
        %v255 = vld [vmem:[%s180 + $0x38] sm:$0xff]
        %v256 = vld [vmem:[%s180 + $0x40] sm:$0xff]
        %v257 = vld [vmem:[%s180 + $0x48] sm:$0xff]
        %v258 = vld [vmem:[%s180 + $0x50] sm:$0xff]
        %v259 = vld [vmem:[%s180 + $0x58] sm:$0xff]
        %v260 = vld [vmem:[%s180 + $0x60] sm:$0xff]
        %v261 = vld [vmem:[%s180 + $0x68] sm:$0xff]
        %v262 = vld [vmem:[%s180 + $0x70] sm:$0xff]
        %v263 = vld [vmem:[%s180 + $0x78] sm:$0xff]
        %v280 = vunpack.c.l.b16 %v232
        %v281 = vunpack.c.l.b16 %v233
        %v282 = vunpack.c.l.b16 %v234
        %v283 = vunpack.c.l.b16 %v235
        %v284 = vunpack.c.l.b16 %v236
        %v285 = vunpack.c.l.b16 %v237
        %v286 = vunpack.c.l.b16 %v238
        %v287 = vunpack.c.l.b16 %v239
        %v288 = vunpack.c.l.b16 %v240
        %v289 = vunpack.c.l.b16 %v241
        %v290 = vunpack.c.l.b16 %v242
        %v291 = vunpack.c.l.b16 %v243
        %v292 = vunpack.c.l.b16 %v244
        %v293 = vunpack.c.l.b16 %v245
        %v294 = vunpack.c.l.b16 %v246
        %v295 = vunpack.c.l.b16 %v247
        %v296 = vpack.c.b16 %v281, %v280
        %v297 = vpack.c.b16 %v283, %v282
        %v298 = vpack.c.b16 %v285, %v284
        %v299 = vpack.c.b16 %v287, %v286
        %v300 = vpack.c.b16 %v289, %v288
        %v301 = vpack.c.b16 %v291, %v290
        %v302 = vpack.c.b16 %v293, %v292
        %v303 = vpack.c.b16 %v295, %v294
        %312 = vmatprep.subr.bf16.mxu0 0
        %313 = vmatpush1.bf16.msra.mxu0 %v296
        %314 = vmatprep.subr.bf16.mxu0 0
        %315 = vmatpush1.bf16.msra.mxu0 %v297
        %316 = vmatprep.subr.bf16.mxu0 0
        %317 = vmatpush1.bf16.msra.mxu0 %v298
        %318 = vmatprep.subr.bf16.mxu0 0
        %319 = vmatpush1.bf16.msra.mxu0 %v299
        %320 = vmatprep.subr.bf16.mxu0 0
        %321 = vmatpush1.bf16.msra.mxu0 %v300
        %322 = vmatprep.subr.bf16.mxu0 0
        %323 = vmatpush1.bf16.msra.mxu0 %v301
        %324 = vmatprep.subr.bf16.mxu0 0
        %325 = vmatpush1.bf16.msra.mxu0 %v302
        %326 = vmatprep.subr.bf16.mxu0 0
        %327 = vmatpush1.bf16.msra.mxu0 %v303
        %328 = vmatprep.subr.bf16.mxu0 0
        %329 = vmatpush1.bf16.msra.mxu0 0
        %330 = vmatprep.subr.bf16.mxu0 0
        %331 = vmatpush1.bf16.msra.mxu0 0
        %332 = vmatprep.subr.bf16.mxu0 0
        %333 = vmatpush1.bf16.msra.mxu0 0
        %334 = vmatprep.subr.bf16.mxu0 0
        %335 = vmatpush1.bf16.msra.mxu0 0
        %336 = vmatprep.subr.bf16.mxu0 0
        %337 = vmatpush1.bf16.msra.mxu0 0
        %338 = vmatprep.subr.bf16.mxu0 0
        %339 = vmatpush1.bf16.msra.mxu0 0
        %340 = vmatprep.subr.bf16.mxu0 0
        %341 = vmatpush1.bf16.msra.mxu0 0
        %342 = vmatprep.subr.bf16.mxu0 0
        %343 = vmatpush1.bf16.msra.mxu0 0
        %344 = vmatprep.mubr.bf16.mxu0 0
        %345 = vmatmul.mubr.bf16.gmra.mrb[0].mxu0 %v219
        %v346 = vpop.f32.mrb[0].mxu0
        %v347 = vadd.f32 0.0, %v346
        %v348 = vpop.f32.mrb[0].mxu0
        %v349 = vpop.f32.mrb[0].mxu0
        %v350 = vadd.f32 0.0, %v349
        %v351 = vpop.f32.mrb[0].mxu0
        %352 = vmatprep.mubr.bf16.mxu0 0
        %353 = vmatmul.mubr.bf16.gmra.mrb[0].mxu0 %v220
        %v354 = vpop.f32.mrb[0].mxu0
        %v355 = vadd.f32 0.0, %v354
        %v356 = vpop.f32.mrb[0].mxu0
        %v357 = vpop.f32.mrb[0].mxu0
        %v358 = vadd.f32 0.0, %v357
        %v359 = vpop.f32.mrb[0].mxu0
        %360 = vmatprep.mubr.bf16.mxu0 0
        %361 = vmatmul.mubr.bf16.gmra.mrb[0].mxu0 %v221
        %v362 = vpop.f32.mrb[0].mxu0
        %v363 = vadd.f32 0.0, %v362
        %v364 = vpop.f32.mrb[0].mxu0
        %v365 = vpop.f32.mrb[0].mxu0
        %v366 = vadd.f32 0.0, %v365
        %v367 = vpop.f32.mrb[0].mxu0
        %368 = vmatprep.mubr.bf16.mxu0 0
        %369 = vmatmul.mubr.bf16.gmra.mrb[0].mxu0 %v222
        %v370 = vpop.f32.mrb[0].mxu0
        %v371 = vadd.f32 0.0, %v370
        %v372 = vpop.f32.mrb[0].mxu0
        %v373 = vpop.f32.mrb[0].mxu0
        %v374 = vadd.f32 0.0, %v373
        %v375 = vpop.f32.mrb[0].mxu0
        %376 = vmatprep.mubr.bf16.mxu0 0
        %377 = vmatmul.mubr.bf16.gmra.mrb[0].mxu0 %v223
        %v378 = vpop.f32.mrb[0].mxu0
        %v379 = vadd.f32 0.0, %v378
        %v380 = vpop.f32.mrb[0].mxu0
        %v381 = vpop.f32.mrb[0].mxu0
        %v382 = vadd.f32 0.0, %v381
        %v383 = vpop.f32.mrb[0].mxu0
        %384 = vmatprep.mubr.bf16.mxu0 0
        %385 = vmatmul.mubr.bf16.gmra.mrb[0].mxu0 %v224
        %v386 = vpop.f32.mrb[0].mxu0
        %v387 = vadd.f32 0.0, %v386
        %v388 = vpop.f32.mrb[0].mxu0
        %v389 = vpop.f32.mrb[0].mxu0
        %v390 = vadd.f32 0.0, %v389
        %v391 = vpop.f32.mrb[0].mxu0
        %392 = vmatprep.mubr.bf16.mxu0 0
        %393 = vmatmul.mubr.bf16.gmra.mrb[0].mxu0 %v225
        %v394 = vpop.f32.mrb[0].mxu0
        %v395 = vadd.f32 0.0, %v394
        %v396 = vpop.f32.mrb[0].mxu0
        %v397 = vpop.f32.mrb[0].mxu0
        %v398 = vadd.f32 0.0, %v397
        %v399 = vpop.f32.mrb[0].mxu0
        %400 = vmatprep.mubr.bf16.mxu0 0
        %401 = vmatmul.mubr.bf16.gmra.mrb[0].mxu0 %v226
        %v402 = vpop.f32.mrb[0].mxu0
        %v403 = vadd.f32 0.0, %v402
        %v404 = vpop.f32.mrb[0].mxu0
        %v405 = vpop.f32.mrb[0].mxu0
        %v406 = vadd.f32 0.0, %v405
        %v407 = vpop.f32.mrb[0].mxu0
        %408 = vdwg.mxu0
        %v409 = vadd.f32 %v248, %v347
        %v410 = vadd.f32 %v249, %v350
        %v411 = vadd.f32 %v250, %v355
        %v412 = vadd.f32 %v251, %v358
        %v413 = vadd.f32 %v252, %v363
        %v414 = vadd.f32 %v253, %v366
        %v415 = vadd.f32 %v254, %v371
        %v416 = vadd.f32 %v255, %v374
        %v417 = vadd.f32 %v256, %v379
        %v418 = vadd.f32 %v257, %v382
        %v419 = vadd.f32 %v258, %v387
        %v420 = vadd.f32 %v259, %v390
        %v421 = vadd.f32 %v260, %v395
        %v422 = vadd.f32 %v261, %v398
        %v423 = vadd.f32 %v262, %v403
        %v424 = vadd.f32 %v263, %v406
        %425 = vst [vmem:[%s180] sm:$0xff] %v409
        %426 = vst [vmem:[%s180 + $0x8] sm:$0xff] %v410
        %427 = vst [vmem:[%s180 + $0x10] sm:$0xff] %v411
        %428 = vst [vmem:[%s180 + $0x18] sm:$0xff] %v412
        %429 = vst [vmem:[%s180 + $0x20] sm:$0xff] %v413
        %430 = vst [vmem:[%s180 + $0x28] sm:$0xff] %v414
        %431 = vst [vmem:[%s180 + $0x30] sm:$0xff] %v415
        %432 = vst [vmem:[%s180 + $0x38] sm:$0xff] %v416
        %433 = vst [vmem:[%s180 + $0x40] sm:$0xff] %v417
        %434 = vst [vmem:[%s180 + $0x48] sm:$0xff] %v418
        %435 = vst [vmem:[%s180 + $0x50] sm:$0xff] %v419
        %436 = vst [vmem:[%s180 + $0x58] sm:$0xff] %v420
        %437 = vst [vmem:[%s180 + $0x60] sm:$0xff] %v421
        %438 = vst [vmem:[%s180 + $0x68] sm:$0xff] %v422
        %439 = vst [vmem:[%s180 + $0x70] sm:$0xff] %v423
        %440 = vst [vmem:[%s180 + $0x78] sm:$0xff] %v424
        %s441 = smul.u32 16, %s20
        %p442 = scmp.lt.s32.totalorder %s441, 31
        %s443 = scalar_select %p442, %s441, 31
        %s444 = smul.addr %s443, 8
        %s445 = scalar_lea.vmem %s2, %s444
        // Predicated region
        $region37: #{_lambda_.1} parent=27 // pred_check
          %p446 = pneg %p95
        $region38: #{_lambda_.1} parent=27 // pred_check_branch
          %448 = sbr.rel (%p446) target = $region40
        $region39: #{_lambda_.1} parent=27 // pred_region
          %s449 = smul.u32 16, %s20
        $region40: #{_lambda_.1} parent=27 // pred_fallthru
          _
      $region28: #{_lambda_.1} parent=5 // pred_fallthru
        _
      %p450 = scmp.le.s32.totalorder 2, %s11
      // Predicated region
      $region41: #{_lambda_.1} parent=5 // pred_check
        %p451 = pneg %p450
      $region42: #{_lambda_.1} parent=5 // pred_check_branch
        %453 = sbr.rel (%p451) target = $region44
      $region43: #{_lambda_.1} parent=5 // pred_region
        %s454 = ssub.s32 %s11, 2
        // Predicated region
        $region45: #{_lambda_.1} parent=43 // pred_check
          %p455 = pneg %p101
        $region46: #{_lambda_.1} parent=43 // pred_check_branch
          %457 = sbr.rel (%p455) target = $region48
        $region47: #{_lambda_.1} parent=43 // pred_region
          %s458 = smul.u32 16, %s22
          %p459 = scmp.lt.s32.totalorder %s458, 31
          %s460 = scalar_select %p459, %s458, 31
          %s461 = smul.addr %s460, 8
          %s462 = scalar_lea.vmem %s2, %s461
        $region48: #{_lambda_.1} parent=43 // pred_fallthru
          _
      $region44: #{_lambda_.1} parent=5 // pred_fallthru
        _
    $region6: #{_lambda_.1} parent=1 // loop_footer
      %s15 = sadd.s32 1, %s11
    $region7: #{_lambda_.1} parent=1 // loop_footer_branch
      %10 = sbr.rel target = $region3
    $region8: #{_lambda_.1} parent=1 // loop_exit
      _
    %463 = vsyncpa [#allocation3], 1
    %s464 = scalar_lea.sflag [#allocation3], 1
    %465 = vsyncpa %s464, 1

</llo_original>
